<compile_context>
chip_gen: v7x
topology: tpu7x:2x2x1
jax: 0.10.0
libtpu: 0.0.40
codegen_flags: <defaults>
</compile_context>

<pallas_src>
import functools

import jax
import jax.numpy as jnp
from jax.experimental import pallas as pl
from jax.experimental.pallas import tpu as pltpu


# ----------------------------------------------------------------------------
# helpers
# ----------------------------------------------------------------------------
def _row_tile(n, pref=256):
    """Largest row tile (multiple of 8, <= pref) that divides n."""
    for t in (pref, 128, 64, 32, 16, 8):
        if n % t == 0:
            return t
    return n


# ----------------------------------------------------------------------------
# Pallas kernels
# ----------------------------------------------------------------------------
def _linear_kernel(x_ref, w_ref, b_ref, o_ref):
    # y = x @ w + b   (row tile of x)
    y = jnp.dot(x_ref[...], w_ref[...], preferred_element_type=jnp.float32)
    o_ref[...] = (y + b_ref[...]).astype(o_ref.dtype)


def linear(x, w, b):
    n, cin = x.shape
    cout = w.shape[1]
    tm = _row_tile(n)
    return pl.pallas_call(
        _linear_kernel,
        out_shape=jax.ShapeDtypeStruct((n, cout), x.dtype),
        grid=(n // tm,),
        in_specs=[
            pl.BlockSpec((tm, cin), lambda i: (i, 0)),
            pl.BlockSpec((cin, cout), lambda i: (0, 0)),
            pl.BlockSpec((1, cout), lambda i: (0, 0)),
        ],
        out_specs=pl.BlockSpec((tm, cout), lambda i: (i, 0)),
        compiler_params=pltpu.CompilerParams(dimension_semantics=("parallel",)),
    )(x, w, b)


def _rgcn_layer_kernel(adj_ref, xall_ref, xrow_ref, wb_ref, root_ref, bias_ref,
                       o_ref):
    """One fused RGCN layer for one row tile:

        out_rows = x_rows + relu( sum_b A~_b[rows,:] @ (X @ bases_b)
                                  + x_rows @ root + bias )
    """
    nb = adj_ref.shape[0]           # num_bases   (static)
    h = root_ref.shape[-1]          # hidden      (static)

    x_all_bf = xall_ref[...].astype(jnp.bfloat16)     # (N, H)
    x_row = xrow_ref[...]                             # (tm, H) f32

    # One wide MXU matmul: X @ [bases_0 | ... | bases_{B-1}]  -> (N, B*H), f32.
    xw = jnp.dot(x_all_bf, wb_ref[...], preferred_element_type=jnp.float32)

    # Self-loop / root term + bias for this row tile.
    acc = jnp.dot(x_row.astype(jnp.bfloat16), root_ref[...],
                  preferred_element_type=jnp.float32) + bias_ref[...]

    # Neighbor aggregation per basis (num_bases is small -> static unroll;
    # slices of the value `xw` are static, so no dynamic lane slicing).
    for b in range(nb):
        acc += jnp.dot(adj_ref[b],
                       xw[:, b * h:(b + 1) * h].astype(jnp.bfloat16),
                       preferred_element_type=jnp.float32)

    # Fused epilogue: ReLU + residual (dropout is identity in eval mode).
    o_ref[...] = (x_row + jnp.maximum(acc, 0.0)).astype(o_ref.dtype)


def rgcn_layer(x, adj_b, w_bases, root, bias):
    """x:(N,H) f32, adj_b:(B,N,N) bf16, w_bases:(H,B*H) bf16, root:(H,H) bf16."""
    n, h = x.shape
    nb = adj_b.shape[0]
    tm = _row_tile(n)
    return pl.pallas_call(
        _rgcn_layer_kernel,
        out_shape=jax.ShapeDtypeStruct((n, h), x.dtype),
        grid=(n // tm,),
        in_specs=[
            pl.BlockSpec((nb, tm, n), lambda i: (0, i, 0)),   # A~[:, rows, :]
            pl.BlockSpec((n, h), lambda i: (0, 0)),           # X (full, for X@bases)
            pl.BlockSpec((tm, h), lambda i: (i, 0)),          # X row tile (root/residual)
            pl.BlockSpec((h, nb * h), lambda i: (0, 0)),      # concatenated bases
            pl.BlockSpec((h, h), lambda i: (0, 0)),           # root
            pl.BlockSpec((1, h), lambda i: (0, 0)),           # bias
        ],
        out_specs=pl.BlockSpec((tm, h), lambda i: (i, 0)),
        compiler_params=pltpu.CompilerParams(dimension_semantics=("parallel",)),
    )(adj_b, x, x, w_bases, root, bias)


# ----------------------------------------------------------------------------
# Model: parameter init + forward
# ----------------------------------------------------------------------------
def init_params(key, in_channels, hidden, out_channels, num_relations,
                num_bases, n_layers):
    ks = jax.random.split(key, 4 + 4 * n_layers)
    p = {
        "w1": jax.random.normal(ks[0], (in_channels, hidden), jnp.float32) * 0.1,
        "b1": jax.random.normal(ks[1], (1, hidden), jnp.float32) * 0.1,
        "w2": jax.random.normal(ks[2], (hidden, out_channels), jnp.float32) * 0.1,
        "b2": jax.random.normal(ks[3], (1, out_channels), jnp.float32) * 0.1,
        "convs": [],
    }
    for i in range(n_layers):
        kb, kc, kr, kbi = ks[4 + 4 * i: 8 + 4 * i]
        p["convs"].append({
            "bases": jax.random.normal(kb, (num_bases, hidden, hidden), jnp.float32) * 0.1,
            "comp": jax.random.normal(kc, (num_relations, num_bases), jnp.float32) * 0.1,
            "root": jax.random.normal(kr, (hidden, hidden), jnp.float32) * 0.1,
            "bias": jax.random.normal(kbi, (1, hidden), jnp.float32) * 0.1,
        })
    return p


def build_adjacency(edge_index, edge_type, num_nodes, num_relations):
    """Dense, row-normalized (mean aggregation) per-relation adjacency."""
    src, dst = edge_index[0], edge_index[1]
    adj = jnp.zeros((num_relations, num_nodes, num_nodes), jnp.float32)
    adj = adj.at[edge_type, dst, src].add(1.0)
    deg = adj.sum(axis=-1, keepdims=True)
    return adj / jnp.maximum(deg, 1.0)


def _layer_operands(cp, adj, hidden):
    """Plain-JAX glue: fold the basis coefficients into the adjacency and
    concatenate the basis weights (bf16 storage, f32 accumulation in-kernel)."""
    num_bases = cp["bases"].shape[0]
    # sum_r A_r X (sum_b comp[r,b] bases_b) = sum_b (sum_r comp[r,b] A_r) X bases_b
    adj_b = jnp.einsum("rb,rnm->bnm", cp["comp"], adj).astype(jnp.bfloat16)
    w_bases = (cp["bases"].transpose(1, 0, 2)
               .reshape(hidden, num_bases * hidden).astype(jnp.bfloat16))
    root = cp["root"].astype(jnp.bfloat16)
    return adj_b, w_bases, root


@functools.partial(jax.jit, static_argnames=("n_layers",))
def res_rgcn_forward(params, x, adj, n_layers):
    x = linear(x, params["w1"], params["b1"])
    hidden = x.shape[1]
    # The reference discards the final conv's output -> run only n_layers-1
    # convs (bit-identical result, one full layer of work saved).
    for i in range(n_layers - 1):
        cp = params["convs"][i]
        adj_b, w_bases, root = _layer_operands(cp, adj, hidden)
        x = rgcn_layer(x, adj_b, w_bases, root, cp["bias"])
    x = linear(x, params["w2"], params["b2"])
    return x


def ref_forward(params, x, adj, n_layers):
    """Pure-JAX reference mirroring the kernel's bf16-storage / f32-accum math."""
    x = x @ params["w1"] + params["b1"]
    h = x.shape[1]
    for i in range(n_layers - 1):
        cp = params["convs"][i]
        nb = cp["bases"].shape[0]
        adj_b, w_bases, root = _layer_operands(cp, adj, h)
        xw = jnp.dot(x.astype(jnp.bfloat16), w_bases,
                     preferred_element_type=jnp.float32)
        acc = jnp.dot(x.astype(jnp.bfloat16), root,
                      preferred_element_type=jnp.float32) + cp["bias"]
        for b in range(nb):
            acc = acc + jnp.dot(adj_b[b],
                                xw[:, b * h:(b + 1) * h].astype(jnp.bfloat16),
                                preferred_element_type=jnp.float32)
        x = x + jnp.maximum(acc, 0.0)
    return x @ params["w2"] + params["b2"]


# ----------------------------------------------------------------------------
if __name__ == "__main__":
    in_channels, hidden, out_channels = 16, 32, 8
    num_relations, num_bases, n_layers = 3, 2, 3
    num_nodes, num_edges = 32, 64

    key = jax.random.PRNGKey(0)
    k_x, k_src, k_dst, k_type, k_params = jax.random.split(key, 5)

    x = jax.random.normal(k_x, (num_nodes, in_channels), jnp.float32)
    edge_index = jnp.stack([
        jax.random.randint(k_src, (num_edges,), 0, num_nodes),
        jax.random.randint(k_dst, (num_edges,), 0, num_nodes),
    ])
    edge_type = jax.random.randint(k_type, (num_edges,), 0, num_relations)

    params = init_params(k_params, in_channels, hidden, out_channels,
                         num_relations, num_bases, n_layers)
    adj = build_adjacency(edge_index, edge_type, num_nodes, num_relations)

    out = res_rgcn_forward(params, x, adj, n_layers)
    out = jax.block_until_ready(out)

    ref = ref_forward(params, x, adj, n_layers)
    assert out.shape == (num_nodes, out_channels)
    assert jnp.allclose(out, ref, atol=2e-3, rtol=2e-3)

    print("KERNEL_OK")
</pallas_src>

<mosaic_0001>
module attributes {stable_mosaic.version = 11 : i64} {
  func.func @_rgcn_layer_kernel(%arg0: i32, %arg1: memref<2x32x32xbf16, #tpu.memory_space<vmem>>, %arg2: memref<32x32xf32, #tpu.memory_space<vmem>>, %arg3: memref<32x32xf32, #tpu.memory_space<vmem>>, %arg4: memref<32x64xbf16, #tpu.memory_space<vmem>>, %arg5: memref<32x32xbf16, #tpu.memory_space<vmem>>, %arg6: memref<1x32xf32, #tpu.memory_space<vmem>>, %arg7: memref<32x32xf32, #tpu.memory_space<vmem>>) attributes {dimension_semantics = [#tpu.dimension_semantics<parallel>], iteration_bounds = array<i64: 1>, scalar_prefetch = 0 : i64, scratch_operands = 0 : i64, tpu.core_type = #tpu.core_type<tc>, window_params = [{transform_indices = @transform_0, window_bounds = array<i64: 2, 32, 32>}, {pipeline_mode = #tpu.pipeline_mode<synchronous>, transform_indices = @transform_1, window_bounds = array<i64: 32, 32>}, {transform_indices = @transform_2, window_bounds = array<i64: 32, 32>}, {pipeline_mode = #tpu.pipeline_mode<synchronous>, transform_indices = @transform_3, window_bounds = array<i64: 32, 64>}, {pipeline_mode = #tpu.pipeline_mode<synchronous>, transform_indices = @transform_4, window_bounds = array<i64: 32, 32>}, {pipeline_mode = #tpu.pipeline_mode<synchronous>, transform_indices = @transform_5, window_bounds = array<i64: 1, 32>}, {transform_indices = @transform_6, window_bounds = array<i64: 32, 32>}]} {
    %c0 = arith.constant 0 : index
    %c0_0 = arith.constant 0 : index
    %0 = vector.load %arg2[%c0, %c0_0] : memref<32x32xf32, #tpu.memory_space<vmem>>, vector<32x32xf32>
    %1 = arith.truncf %0 : vector<32x32xf32> to vector<32x32xbf16>
    %c0_1 = arith.constant 0 : index
    %c0_2 = arith.constant 0 : index
    %2 = vector.load %arg3[%c0_1, %c0_2] : memref<32x32xf32, #tpu.memory_space<vmem>>, vector<32x32xf32>
    %c0_3 = arith.constant 0 : index
    %c0_4 = arith.constant 0 : index
    %3 = vector.load %arg4[%c0_3, %c0_4] : memref<32x64xbf16, #tpu.memory_space<vmem>>, vector<32x64xbf16>
    %cst = arith.constant dense<0.000000e+00> : vector<32x64xf32>
    %4 = tpu.matmul %1, %3, %cst {dimension_numbers = #tpu.dot_dimension_numbers<[1], [0], [0], [1], [0, 0, 1, 1], [], []>} : vector<32x32xbf16>, vector<32x64xbf16>, vector<32x64xf32> -> vector<32x64xf32>
    %5 = arith.truncf %2 : vector<32x32xf32> to vector<32x32xbf16>
    %c0_5 = arith.constant 0 : index
    %c0_6 = arith.constant 0 : index
    %6 = vector.load %arg5[%c0_5, %c0_6] : memref<32x32xbf16, #tpu.memory_space<vmem>>, vector<32x32xbf16>
    %cst_7 = arith.constant dense<0.000000e+00> : vector<32x32xf32>
    %7 = tpu.matmul %5, %6, %cst_7 {dimension_numbers = #tpu.dot_dimension_numbers<[1], [0], [0], [1], [0, 0, 1, 1], [], []>} : vector<32x32xbf16>, vector<32x32xbf16>, vector<32x32xf32> -> vector<32x32xf32>
    %c0_8 = arith.constant 0 : index
    %c0_9 = arith.constant 0 : index
    %8 = vector.load %arg6[%c0_8, %c0_9] : memref<1x32xf32, #tpu.memory_space<vmem>>, vector<1x32xf32>
    %9 = vector.broadcast %8 : vector<1x32xf32> to vector<32x32xf32>
    %10 = arith.addf %7, %9 : vector<32x32xf32>
    %c0_10 = arith.constant 0 : index
    %c0_11 = arith.constant 0 : index
    %c0_12 = arith.constant 0 : index
    %11 = vector.load %arg1[%c0_10, %c0_11, %c0_12] : memref<2x32x32xbf16, #tpu.memory_space<vmem>>, vector<1x32x32xbf16>
    %12 = vector.shape_cast %11 : vector<1x32x32xbf16> to vector<32x32xbf16>
    %13 = vector.extract_strided_slice %4 {offsets = [0, 0], sizes = [32, 32], strides = [1, 1]} : vector<32x64xf32> to vector<32x32xf32>
    %14 = arith.truncf %13 : vector<32x32xf32> to vector<32x32xbf16>
    %cst_13 = arith.constant dense<0.000000e+00> : vector<32x32xf32>
    %15 = tpu.matmul %12, %14, %cst_13 {dimension_numbers = #tpu.dot_dimension_numbers<[1], [0], [0], [1], [0, 0, 1, 1], [], []>} : vector<32x32xbf16>, vector<32x32xbf16>, vector<32x32xf32> -> vector<32x32xf32>
    %16 = arith.addf %10, %15 : vector<32x32xf32>
    %c1 = arith.constant 1 : index
    %c0_14 = arith.constant 0 : index
    %c0_15 = arith.constant 0 : index
    %17 = vector.load %arg1[%c1, %c0_14, %c0_15] : memref<2x32x32xbf16, #tpu.memory_space<vmem>>, vector<1x32x32xbf16>
    %18 = vector.shape_cast %17 : vector<1x32x32xbf16> to vector<32x32xbf16>
    %19 = vector.extract_strided_slice %4 {offsets = [0, 32], sizes = [32, 32], strides = [1, 1]} : vector<32x64xf32> to vector<32x32xf32>
    %20 = arith.truncf %19 : vector<32x32xf32> to vector<32x32xbf16>
    %cst_16 = arith.constant dense<0.000000e+00> : vector<32x32xf32>
    %21 = tpu.matmul %18, %20, %cst_16 {dimension_numbers = #tpu.dot_dimension_numbers<[1], [0], [0], [1], [0, 0, 1, 1], [], []>} : vector<32x32xbf16>, vector<32x32xbf16>, vector<32x32xf32> -> vector<32x32xf32>
    %22 = arith.addf %16, %21 : vector<32x32xf32>
    %cst_17 = arith.constant 0.000000e+00 : f32
    %23 = vector.broadcast %cst_17 : f32 to vector<32x32xf32>
    %24 = arith.maximumf %22, %23 : vector<32x32xf32>
    %25 = arith.addf %2, %24 : vector<32x32xf32>
    %c0_18 = arith.constant 0 : index
    %c0_19 = arith.constant 0 : index
    %26 = vector.load %arg7[%c0_18, %c0_19] : memref<32x32xf32, #tpu.memory_space<vmem>>, vector<32x32xf32>
    tpu.vector_store %arg7[%c0_18, %c0_19], %25 {strides = array<i32>} : memref<32x32xf32, #tpu.memory_space<vmem>>, vector<32x32xf32>,
    return
  }
  func.func @transform_0(%arg0: i32) -> (i32, i32, i32) {
    %c0_i32 = arith.constant 0 : i32
    %c0_i32_0 = arith.constant 0 : i32
    %c0_i32_1 = arith.constant 0 : i32
    return %c0_i32, %arg0, %c0_i32_0 : i32, i32, i32
  }
  func.func @transform_1(%arg0: i32) -> (i32, i32) {
    %c0_i32 = arith.constant 0 : i32
    %c0_i32_0 = arith.constant 0 : i32
    %c0_i32_1 = arith.constant 0 : i32
    return %c0_i32, %c0_i32_0 : i32, i32
  }
  func.func @transform_2(%arg0: i32) -> (i32, i32) {
    %c0_i32 = arith.constant 0 : i32
    %c0_i32_0 = arith.constant 0 : i32
    return %arg0, %c0_i32 : i32, i32
  }
  func.func @transform_3(%arg0: i32) -> (i32, i32) {
    %c0_i32 = arith.constant 0 : i32
    %c0_i32_0 = arith.constant 0 : i32
    %c0_i32_1 = arith.constant 0 : i32
    return %c0_i32, %c0_i32_0 : i32, i32
  }
  func.func @transform_4(%arg0: i32) -> (i32, i32) {
    %c0_i32 = arith.constant 0 : i32
    %c0_i32_0 = arith.constant 0 : i32
    %c0_i32_1 = arith.constant 0 : i32
    return %c0_i32, %c0_i32_0 : i32, i32
  }
  func.func @transform_5(%arg0: i32) -> (i32, i32) {
    %c0_i32 = arith.constant 0 : i32
    %c0_i32_0 = arith.constant 0 : i32
    %c0_i32_1 = arith.constant 0 : i32
    return %c0_i32, %c0_i32_0 : i32, i32
  }
  func.func @transform_6(%arg0: i32) -> (i32, i32) {
    %c0_i32 = arith.constant 0 : i32
    %c0_i32_0 = arith.constant 0 : i32
    return %arg0, %c0_i32 : i32, i32
  }
}

module attributes {stable_mosaic.version = 11 : i64} {
  func.func @_linear_kernel(%arg0: i32, %arg1: memref<32x16xf32, #tpu.memory_space<vmem>>, %arg2: memref<16x32xf32, #tpu.memory_space<vmem>>, %arg3: memref<1x32xf32, #tpu.memory_space<vmem>>, %arg4: memref<32x32xf32, #tpu.memory_space<vmem>>) attributes {dimension_semantics = [#tpu.dimension_semantics<parallel>], iteration_bounds = array<i64: 1>, scalar_prefetch = 0 : i64, scratch_operands = 0 : i64, tpu.core_type = #tpu.core_type<tc>, window_params = [{transform_indices = @transform_0, window_bounds = array<i64: 32, 16>}, {pipeline_mode = #tpu.pipeline_mode<synchronous>, transform_indices = @transform_1, window_bounds = array<i64: 16, 32>}, {pipeline_mode = #tpu.pipeline_mode<synchronous>, transform_indices = @transform_2, window_bounds = array<i64: 1, 32>}, {transform_indices = @transform_3, window_bounds = array<i64: 32, 32>}]} {
    %c0 = arith.constant 0 : index
    %c0_0 = arith.constant 0 : index
    %0 = vector.load %arg1[%c0, %c0_0] : memref<32x16xf32, #tpu.memory_space<vmem>>, vector<32x16xf32>
    %c0_1 = arith.constant 0 : index
    %c0_2 = arith.constant 0 : index
    %1 = vector.load %arg2[%c0_1, %c0_2] : memref<16x32xf32, #tpu.memory_space<vmem>>, vector<16x32xf32>
    %cst = arith.constant dense<0.000000e+00> : vector<32x32xf32>
    %2 = tpu.matmul %0, %1, %cst {dimension_numbers = #tpu.dot_dimension_numbers<[1], [0], [0], [1], [0, 0, 1, 1], [], []>} : vector<32x16xf32>, vector<16x32xf32>, vector<32x32xf32> -> vector<32x32xf32>
    %c0_3 = arith.constant 0 : index
    %c0_4 = arith.constant 0 : index
    %3 = vector.load %arg3[%c0_3, %c0_4] : memref<1x32xf32, #tpu.memory_space<vmem>>, vector<1x32xf32>
    %4 = vector.broadcast %3 : vector<1x32xf32> to vector<32x32xf32>
    %5 = arith.addf %2, %4 : vector<32x32xf32>
    %c0_5 = arith.constant 0 : index
    %c0_6 = arith.constant 0 : index
    %6 = vector.load %arg4[%c0_5, %c0_6] : memref<32x32xf32, #tpu.memory_space<vmem>>, vector<32x32xf32>
    tpu.vector_store %arg4[%c0_5, %c0_6], %5 {strides = array<i32>} : memref<32x32xf32, #tpu.memory_space<vmem>>, vector<32x32xf32>,
    return
  }
  func.func @transform_0(%arg0: i32) -> (i32, i32) {
    %c0_i32 = arith.constant 0 : i32
    %c0_i32_0 = arith.constant 0 : i32
    return %arg0, %c0_i32 : i32, i32
  }
  func.func @transform_1(%arg0: i32) -> (i32, i32) {
    %c0_i32 = arith.constant 0 : i32
    %c0_i32_0 = arith.constant 0 : i32
    %c0_i32_1 = arith.constant 0 : i32
    return %c0_i32, %c0_i32_0 : i32, i32
  }
  func.func @transform_2(%arg0: i32) -> (i32, i32) {
    %c0_i32 = arith.constant 0 : i32
    %c0_i32_0 = arith.constant 0 : i32
    %c0_i32_1 = arith.constant 0 : i32
    return %c0_i32, %c0_i32_0 : i32, i32
  }
  func.func @transform_3(%arg0: i32) -> (i32, i32) {
    %c0_i32 = arith.constant 0 : i32
    %c0_i32_0 = arith.constant 0 : i32
    return %arg0, %c0_i32 : i32, i32
  }
}

module attributes {stable_mosaic.version = 11 : i64} {
  func.func @_linear_kernel(%arg0: i32, %arg1: memref<32x32xf32, #tpu.memory_space<vmem>>, %arg2: memref<32x8xf32, #tpu.memory_space<vmem>>, %arg3: memref<1x8xf32, #tpu.memory_space<vmem>>, %arg4: memref<32x8xf32, #tpu.memory_space<vmem>>) attributes {dimension_semantics = [#tpu.dimension_semantics<parallel>], iteration_bounds = array<i64: 1>, scalar_prefetch = 0 : i64, scratch_operands = 0 : i64, tpu.core_type = #tpu.core_type<tc>, window_params = [{transform_indices = @transform_0, window_bounds = array<i64: 32, 32>}, {pipeline_mode = #tpu.pipeline_mode<synchronous>, transform_indices = @transform_1, window_bounds = array<i64: 32, 8>}, {pipeline_mode = #tpu.pipeline_mode<synchronous>, transform_indices = @transform_2, window_bounds = array<i64: 1, 8>}, {transform_indices = @transform_3, window_bounds = array<i64: 32, 8>}]} {
    %c0 = arith.constant 0 : index
    %c0_0 = arith.constant 0 : index
    %0 = vector.load %arg1[%c0, %c0_0] : memref<32x32xf32, #tpu.memory_space<vmem>>, vector<32x32xf32>
    %c0_1 = arith.constant 0 : index
    %c0_2 = arith.constant 0 : index
    %1 = vector.load %arg2[%c0_1, %c0_2] : memref<32x8xf32, #tpu.memory_space<vmem>>, vector<32x8xf32>
    %cst = arith.constant dense<0.000000e+00> : vector<32x8xf32>
    %2 = tpu.matmul %0, %1, %cst {dimension_numbers = #tpu.dot_dimension_numbers<[1], [0], [0], [1], [0, 0, 1, 1], [], []>} : vector<32x32xf32>, vector<32x8xf32>, vector<32x8xf32> -> vector<32x8xf32>
    %c0_3 = arith.constant 0 : index
    %c0_4 = arith.constant 0 : index
    %3 = vector.load %arg3[%c0_3, %c0_4] : memref<1x8xf32, #tpu.memory_space<vmem>>, vector<1x8xf32>
    %4 = vector.broadcast %3 : vector<1x8xf32> to vector<32x8xf32>
    %5 = arith.addf %2, %4 : vector<32x8xf32>
    %c0_5 = arith.constant 0 : index
    %c0_6 = arith.constant 0 : index
    %6 = vector.load %arg4[%c0_5, %c0_6] : memref<32x8xf32, #tpu.memory_space<vmem>>, vector<32x8xf32>
    tpu.vector_store %arg4[%c0_5, %c0_6], %5 {strides = array<i32>} : memref<32x8xf32, #tpu.memory_space<vmem>>, vector<32x8xf32>,
    return
  }
  func.func @transform_0(%arg0: i32) -> (i32, i32) {
    %c0_i32 = arith.constant 0 : i32
    %c0_i32_0 = arith.constant 0 : i32
    return %arg0, %c0_i32 : i32, i32
  }
  func.func @transform_1(%arg0: i32) -> (i32, i32) {
    %c0_i32 = arith.constant 0 : i32
    %c0_i32_0 = arith.constant 0 : i32
    %c0_i32_1 = arith.constant 0 : i32
    return %c0_i32, %c0_i32_0 : i32, i32
  }
  func.func @transform_2(%arg0: i32) -> (i32, i32) {
    %c0_i32 = arith.constant 0 : i32
    %c0_i32_0 = arith.constant 0 : i32
    %c0_i32_1 = arith.constant 0 : i32
    return %c0_i32, %c0_i32_0 : i32, i32
  }
  func.func @transform_3(%arg0: i32) -> (i32, i32) {
    %c0_i32 = arith.constant 0 : i32
    %c0_i32_0 = arith.constant 0 : i32
    return %arg0, %c0_i32 : i32, i32
  }
}

</mosaic_0001>

<llo_original>
// kernel: res_rgcn_forward.4
$region0: #{res_rgcn_forward.4}
  #allocation0 [shape = 'u32[]', space=smem, size = 0x4, offset = 0x4, fixed_abs, tag = 'smem constant byte address 0x4 - core index']
  #allocation1 [shape = 'u32[144,128]{1,0:T(1,128)}', space=vmem, size = 0x12000, scoped, tag = 'internal scratch']
  %s0 = inlined_call_operand.vmem [shape: f32[32,16], index: 0, kind: input, shape index: {}]
  %s1 = inlined_call_operand.vmem [shape: f32[16,32], index: 1, kind: input, shape index: {}]
  %s2 = inlined_call_operand.vmem [shape: f32[1,32], index: 2, kind: input, shape index: {}]
  %s3 = inlined_call_operand.vmem [shape: f32[32,32], index: 3, kind: output, shape index: {}]
  %s4 = sld [smem:[#allocation0]]
  $region22: #{res_rgcn_forward.4} parent=0
    _
  %s6 = ssub.s32 1, %s4
  %s7 = scalar_select 0, %s6, %s4
  // Predicated region
  $region2: #{res_rgcn_forward.4} parent=0 // pred_check
    _
  $region3: #{res_rgcn_forward.4} parent=0 // pred_check_branch
    %9 = sbr.rel (0) target = $region5
  $region4: #{res_rgcn_forward.4} parent=0 // pred_region
    _
  $region5: #{res_rgcn_forward.4} parent=0 // pred_fallthru
    _
  // Predicated region
  $region6: #{res_rgcn_forward.4} parent=0 // pred_check
    _
  $region7: #{res_rgcn_forward.4} parent=0 // pred_check_branch
    %11 = sbr.rel (0) target = $region9
  $region8: #{res_rgcn_forward.4} parent=0 // pred_region
    _
  $region9: #{res_rgcn_forward.4} parent=0 // pred_fallthru
    _
  // Predicated region
  $region10: #{res_rgcn_forward.4} parent=0 // pred_check
    _
  $region11: #{res_rgcn_forward.4} parent=0 // pred_check_branch
    %13 = sbr.rel (0) target = $region13
  $region12: #{res_rgcn_forward.4} parent=0 // pred_region
    _
  $region13: #{res_rgcn_forward.4} parent=0 // pred_fallthru
    _
  %v14 = vld [vmem:[%s0] sm:$0xff]
  %v15 = vld [vmem:[%s0 + $0x8] sm:$0xff]
  %v16 = vld [vmem:[%s0 + $0x10] sm:$0xff]
  %v17 = vld [vmem:[%s0 + $0x18] sm:$0xff]
  %v18 = vld [vmem:[%s1] sm:$0xff]
  %v19 = vld [vmem:[%s1 + $0x8] sm:$0xff]
  %v20 = vld [vmem:[%s2] sm:$0x1]
  %v22 = vlaneseq
  %v23 = vshrl.u32 %v22, 7
  %v24 = vsub.s32 0, %v23
  %v25 = vrot.slane %v20, %v24
  %vm27 = vcmask 130048
  %v29 = vsel %vm27, %v14, 0
  %v32 = vsel %vm27, %v15, 0
  %v35 = vsel %vm27, %v16, 0
  %v38 = vsel %vm27, %v17, 0
  %40 = vmatprep.subr.mxu0 0.0
  %41 = vmatpush1.msra.mxu0 %v18
  %42 = vmatprep.subr.mxu0 0.0
  %43 = vmatpush1.msra.mxu0 %v19
  %44 = vmatprep.subr.mxu0 0.0
  %45 = vmatpush1.msra.mxu0 0.0
  %46 = vmatprep.subr.mxu0 0.0
  %47 = vmatpush1.msra.mxu0 0.0
  %48 = vmatprep.subr.mxu0 0.0
  %49 = vmatpush1.msra.mxu0 0.0
  %50 = vmatprep.subr.mxu0 0.0
  %51 = vmatpush1.msra.mxu0 0.0
  %52 = vmatprep.subr.mxu0 0.0
  %53 = vmatpush1.msra.mxu0 0.0
  %54 = vmatprep.subr.mxu0 0.0
  %55 = vmatpush1.msra.mxu0 0.0
  %56 = vmatprep.subr.mxu0 0.0
  %57 = vmatpush1.msra.mxu0 0.0
  %58 = vmatprep.subr.mxu0 0.0
  %59 = vmatpush1.msra.mxu0 0.0
  %60 = vmatprep.subr.mxu0 0.0
  %61 = vmatpush1.msra.mxu0 0.0
  %62 = vmatprep.subr.mxu0 0.0
  %63 = vmatpush1.msra.mxu0 0.0
  %64 = vmatprep.subr.mxu0 0.0
  %65 = vmatpush1.msra.mxu0 0.0
  %66 = vmatprep.subr.mxu0 0.0
  %67 = vmatpush1.msra.mxu0 0.0
  %68 = vmatprep.subr.mxu0 0.0
  %69 = vmatpush1.msra.mxu0 0.0
  %70 = vmatprep.subr.mxu0 0.0
  %71 = vmatpush1.msra.mxu0 0.0
  %72 = vmatprep.subr.mxu0 0.0
  %73 = vmatpush1.msra.mxu0 0.0
  %74 = vmatprep.subr.mxu0 0.0
  %75 = vmatpush1.msra.mxu0 0.0
  %76 = vmatprep.subr.mxu0 0.0
  %77 = vmatpush1.msra.mxu0 0.0
  %78 = vmatprep.subr.mxu0 0.0
  %79 = vmatpush1.msra.mxu0 0.0
  %80 = vmatprep.subr.mxu0 0.0
  %81 = vmatpush1.msra.mxu0 0.0
  %82 = vmatprep.subr.mxu0 0.0
  %83 = vmatpush1.msra.mxu0 0.0
  %84 = vmatprep.subr.mxu0 0.0
  %85 = vmatpush1.msra.mxu0 0.0
  %86 = vmatprep.subr.mxu0 0.0
  %87 = vmatpush1.msra.mxu0 0.0
  %88 = vmatprep.subr.mxu0 0.0
  %89 = vmatpush1.msra.mxu0 0.0
  %90 = vmatprep.subr.mxu0 0.0
  %91 = vmatpush1.msra.mxu0 0.0
  %92 = vmatprep.subr.mxu0 0.0
  %93 = vmatpush1.msra.mxu0 0.0
  %94 = vmatprep.subr.mxu0 0.0
  %95 = vmatpush1.msra.mxu0 0.0
  %96 = vmatprep.subr.mxu0 0.0
  %97 = vmatpush1.msra.mxu0 0.0
  %98 = vmatprep.subr.mxu0 0.0
  %99 = vmatpush1.msra.mxu0 0.0
  %100 = vmatprep.subr.mxu0 0.0
  %101 = vmatpush1.msra.mxu0 0.0
  %102 = vmatprep.subr.mxu0 0.0
  %103 = vmatpush1.msra.mxu0 0.0
  %104 = vmatprep.mubr.f32.mxu0 0.0
  %105 = vmatmul.mubr.f32.gmra.mrb[0].mxu0 %v29
  %v106 = vpop.f32.mrb[0].mxu0
  %v107 = vadd.f32 %v25, %v106
  %v108 = vpop.f32.mrb[0].mxu0
  %109 = vmatprep.mubr.f32.mxu0 0.0
  %110 = vmatmul.mubr.f32.gmra.mrb[0].mxu0 %v32
  %v111 = vpop.f32.mrb[0].mxu0
  %v112 = vadd.f32 %v25, %v111
  %v113 = vpop.f32.mrb[0].mxu0
  %114 = vmatprep.mubr.f32.mxu0 0.0
  %115 = vmatmul.mubr.f32.gmra.mrb[0].mxu0 %v35
  %v116 = vpop.f32.mrb[0].mxu0
  %v117 = vadd.f32 %v25, %v116
  %v118 = vpop.f32.mrb[0].mxu0
  %119 = vmatprep.mubr.f32.mxu0 0.0
  %120 = vmatmul.mubr.f32.gmra.mrb[0].mxu0 %v38
  %v121 = vpop.f32.mrb[0].mxu0
  %v122 = vadd.f32 %v25, %v121
  %v123 = vpop.f32.mrb[0].mxu0
  %124 = vdwg.mxu0
  %vm125 = vcmask 261120
  %126 = vst.msk [vmem:[%s3] sm:$0xff] %vm125, %v107
  %127 = vst.msk [vmem:[%s3 + $0x8] sm:$0xff] %vm125, %v112
  %128 = vst.msk [vmem:[%s3 + $0x10] sm:$0xff] %vm125, %v117
  %129 = vst.msk [vmem:[%s3 + $0x18] sm:$0xff] %vm125, %v122
  // Predicated region
  $region14: #{res_rgcn_forward.4} parent=0 // pred_check
    _
  $region15: #{res_rgcn_forward.4} parent=0 // pred_check_branch
    %131 = sbr.rel (0) target = $region17
  $region16: #{res_rgcn_forward.4} parent=0 // pred_region
    _
  $region17: #{res_rgcn_forward.4} parent=0 // pred_fallthru
    _
  // Predicated region
  $region18: #{res_rgcn_forward.4} parent=0 // pred_check
    _
  $region19: #{res_rgcn_forward.4} parent=0 // pred_check_branch
    %133 = sbr.rel (0) target = $region21
  $region20: #{res_rgcn_forward.4} parent=0 // pred_region
    _
  $region21: #{res_rgcn_forward.4} parent=0 // pred_fallthru
    _

// kernel: res_rgcn_forward.5
$region0: #{res_rgcn_forward.5}
  #allocation0 [shape = 'u32[]', space=smem, size = 0x4, offset = 0x4, fixed_abs, tag = 'smem constant byte address 0x4 - core index']
  #allocation1 [shape = 'u32[144,128]{1,0:T(1,128)}', space=vmem, size = 0x12000, scoped, tag = 'internal scratch']
  %s0 = inlined_call_operand.vmem [shape: bf16[2,32,32], index: 0, kind: input, shape index: {}]
  %s1 = inlined_call_operand.vmem [shape: f32[32,32], index: 1, kind: input, shape index: {}, may-alias: {1,2}]
  %s2 = inlined_call_operand.vmem [shape: f32[32,32], index: 2, kind: input, shape index: {}, may-alias: {1,2}]
  %s3 = inlined_call_operand.vmem [shape: bf16[32,64], index: 3, kind: input, shape index: {}]
  %s4 = inlined_call_operand.vmem [shape: bf16[32,32], index: 4, kind: input, shape index: {}]
  %s5 = inlined_call_operand.vmem [shape: f32[1,32], index: 5, kind: input, shape index: {}]
  %s6 = inlined_call_operand.vmem [shape: f32[32,32], index: 6, kind: output, shape index: {}]
  %s7 = sld [smem:[#allocation0]]
  $region34: #{res_rgcn_forward.5} parent=0
    _
  %s9 = ssub.s32 1, %s7
  %s10 = scalar_select 0, %s9, %s7
  // Predicated region
  $region2: #{res_rgcn_forward.5} parent=0 // pred_check
    _
  $region3: #{res_rgcn_forward.5} parent=0 // pred_check_branch
    %12 = sbr.rel (0) target = $region5
  $region4: #{res_rgcn_forward.5} parent=0 // pred_region
    _
  $region5: #{res_rgcn_forward.5} parent=0 // pred_fallthru
    _
  // Predicated region
  $region6: #{res_rgcn_forward.5} parent=0 // pred_check
    _
  $region7: #{res_rgcn_forward.5} parent=0 // pred_check_branch
    %14 = sbr.rel (0) target = $region9
  $region8: #{res_rgcn_forward.5} parent=0 // pred_region
    _
  $region9: #{res_rgcn_forward.5} parent=0 // pred_fallthru
    _
  // Predicated region
  $region10: #{res_rgcn_forward.5} parent=0 // pred_check
    _
  $region11: #{res_rgcn_forward.5} parent=0 // pred_check_branch
    %16 = sbr.rel (0) target = $region13
  $region12: #{res_rgcn_forward.5} parent=0 // pred_region
    _
  $region13: #{res_rgcn_forward.5} parent=0 // pred_fallthru
    _
  // Predicated region
  $region14: #{res_rgcn_forward.5} parent=0 // pred_check
    _
  $region15: #{res_rgcn_forward.5} parent=0 // pred_check_branch
    %18 = sbr.rel (0) target = $region17
  $region16: #{res_rgcn_forward.5} parent=0 // pred_region
    _
  $region17: #{res_rgcn_forward.5} parent=0 // pred_fallthru
    _
  // Predicated region
  $region18: #{res_rgcn_forward.5} parent=0 // pred_check
    _
  $region19: #{res_rgcn_forward.5} parent=0 // pred_check_branch
    %20 = sbr.rel (0) target = $region21
  $region20: #{res_rgcn_forward.5} parent=0 // pred_region
    _
  $region21: #{res_rgcn_forward.5} parent=0 // pred_fallthru
    _
  // Predicated region
  $region22: #{res_rgcn_forward.5} parent=0 // pred_check
    _
  $region23: #{res_rgcn_forward.5} parent=0 // pred_check_branch
    %22 = sbr.rel (0) target = $region25
  $region24: #{res_rgcn_forward.5} parent=0 // pred_region
    _
  $region25: #{res_rgcn_forward.5} parent=0 // pred_fallthru
    _
  %v24 = vld [vmem:[%s1] sm:$0xff]
  %v25 = vld [vmem:[%s1 + $0x8] sm:$0xff]
  %v26 = vld [vmem:[%s1 + $0x10] sm:$0xff]
  %v27 = vld [vmem:[%s1 + $0x18] sm:$0xff]
  %v28 = vpack.c.bf16 %v25, %v24
  %v29 = vpack.c.bf16 %v27, %v26
  %v30 = vld [vmem:[%s2] sm:$0xff]
  %v31 = vld [vmem:[%s2 + $0x8] sm:$0xff]
  %v32 = vld [vmem:[%s2 + $0x10] sm:$0xff]
  %v33 = vld [vmem:[%s2 + $0x18] sm:$0xff]
  %v34 = vld [vmem:[%s3] sm:$0xf]
  %v35 = vld [vmem:[%s3 + $0x4] sm:$0xf]
  %v36 = vld [vmem:[%s3 + $0x8] sm:$0xf]
  %v37 = vld [vmem:[%s3 + $0xc] sm:$0xf]
  %v42 = vunpack.c.l.b16 %v34
  %v43 = vunpack.c.l.b16 %v35
  %v44 = vunpack.c.l.b16 %v36
  %v45 = vunpack.c.l.b16 %v37
  %v46 = vpack.c.b16 %v43, %v42
  %v47 = vpack.c.b16 %v45, %v44
  %vm50 = vcmask 261120
  %v52 = vsel %vm50, %v28, 0
  %v55 = vsel %vm50, %v29, 0
  %57 = vmatprep.subr.bf16.mxu0 0
  %58 = vmatpush1.bf16.msra.mxu0 %v46
  %59 = vmatprep.subr.bf16.mxu0 0
  %60 = vmatpush1.bf16.msra.mxu0 %v47
  %61 = vmatprep.subr.bf16.mxu0 0
  %62 = vmatpush1.bf16.msra.mxu0 0
  %63 = vmatprep.subr.bf16.mxu0 0
  %64 = vmatpush1.bf16.msra.mxu0 0
  %65 = vmatprep.subr.bf16.mxu0 0
  %66 = vmatpush1.bf16.msra.mxu0 0
  %67 = vmatprep.subr.bf16.mxu0 0
  %68 = vmatpush1.bf16.msra.mxu0 0
  %69 = vmatprep.subr.bf16.mxu0 0
  %70 = vmatpush1.bf16.msra.mxu0 0
  %71 = vmatprep.subr.bf16.mxu0 0
  %72 = vmatpush1.bf16.msra.mxu0 0
  %73 = vmatprep.subr.bf16.mxu0 0
  %74 = vmatpush1.bf16.msra.mxu0 0
  %75 = vmatprep.subr.bf16.mxu0 0
  %76 = vmatpush1.bf16.msra.mxu0 0
  %77 = vmatprep.subr.bf16.mxu0 0
  %78 = vmatpush1.bf16.msra.mxu0 0
  %79 = vmatprep.subr.bf16.mxu0 0
  %80 = vmatpush1.bf16.msra.mxu0 0
  %81 = vmatprep.subr.bf16.mxu0 0
  %82 = vmatpush1.bf16.msra.mxu0 0
  %83 = vmatprep.subr.bf16.mxu0 0
  %84 = vmatpush1.bf16.msra.mxu0 0
  %85 = vmatprep.subr.bf16.mxu0 0
  %86 = vmatpush1.bf16.msra.mxu0 0
  %87 = vmatprep.subr.bf16.mxu0 0
  %88 = vmatpush1.bf16.msra.mxu0 0
  %89 = vmatprep.mubr.bf16.mxu0 0
  %90 = vmatmul.mubr.bf16.gmra.mrb[0].mxu0 %v52
  %v91 = vpop.f32.mrb[0].mxu0
  %v92 = vadd.f32 0.0, %v91
  %v93 = vpop.f32.mrb[0].mxu0
  %v94 = vpop.f32.mrb[0].mxu0
  %v95 = vadd.f32 0.0, %v94
  %v96 = vpop.f32.mrb[0].mxu0
  %97 = vmatprep.mubr.bf16.mxu0 0
  %98 = vmatmul.mubr.bf16.gmra.mrb[0].mxu0 %v55
  %v99 = vpop.f32.mrb[0].mxu0
  %v100 = vadd.f32 0.0, %v99
  %v101 = vpop.f32.mrb[0].mxu0
  %v102 = vpop.f32.mrb[0].mxu0
  %v103 = vadd.f32 0.0, %v102
  %v104 = vpop.f32.mrb[0].mxu0
  %105 = vdwg.mxu0
  %v106 = vpack.c.bf16 %v31, %v30
  %v107 = vpack.c.bf16 %v33, %v32
  %v108 = vld [vmem:[%s4] sm:$0xf]
  %v109 = vld [vmem:[%s4 + $0x4] sm:$0xf]
  %v110 = vld [vmem:[%s4 + $0x8] sm:$0xf]
  %v111 = vld [vmem:[%s4 + $0xc] sm:$0xf]
  %v112 = vld [vmem:[%s5] sm:$0x1]
  %v114 = vlaneseq
  %v115 = vshrl.u32 %v114, 7
  %v116 = vsub.s32 0, %v115
  %v117 = vrot.slane %v112, %v116
  %v123 = vunpack.c.l.b16 %v108
  %v124 = vunpack.c.l.b16 %v109
  %v125 = vunpack.c.l.b16 %v110
  %v126 = vunpack.c.l.b16 %v111
  %v127 = vpack.c.b16 %v124, %v123
  %v128 = vpack.c.b16 %v126, %v125
  %v132 = vsel %vm50, %v106, 0
  %v135 = vsel %vm50, %v107, 0
  %137 = vmatprep.subr.bf16.mxu0 0
  %138 = vmatpush1.bf16.msra.mxu0 %v127
  %139 = vmatprep.subr.bf16.mxu0 0
  %140 = vmatpush1.bf16.msra.mxu0 %v128
  %141 = vmatprep.subr.bf16.mxu0 0
  %142 = vmatpush1.bf16.msra.mxu0 0
  %143 = vmatprep.subr.bf16.mxu0 0
  %144 = vmatpush1.bf16.msra.mxu0 0
  %145 = vmatprep.subr.bf16.mxu0 0
  %146 = vmatpush1.bf16.msra.mxu0 0
  %147 = vmatprep.subr.bf16.mxu0 0
  %148 = vmatpush1.bf16.msra.mxu0 0
  %149 = vmatprep.subr.bf16.mxu0 0
  %150 = vmatpush1.bf16.msra.mxu0 0
  %151 = vmatprep.subr.bf16.mxu0 0
  %152 = vmatpush1.bf16.msra.mxu0 0
  %153 = vmatprep.subr.bf16.mxu0 0
  %154 = vmatpush1.bf16.msra.mxu0 0
  %155 = vmatprep.subr.bf16.mxu0 0
  %156 = vmatpush1.bf16.msra.mxu0 0
  %157 = vmatprep.subr.bf16.mxu0 0
  %158 = vmatpush1.bf16.msra.mxu0 0
  %159 = vmatprep.subr.bf16.mxu0 0
  %160 = vmatpush1.bf16.msra.mxu0 0
  %161 = vmatprep.subr.bf16.mxu0 0
  %162 = vmatpush1.bf16.msra.mxu0 0
  %163 = vmatprep.subr.bf16.mxu0 0
  %164 = vmatpush1.bf16.msra.mxu0 0
  %165 = vmatprep.subr.bf16.mxu0 0
  %166 = vmatpush1.bf16.msra.mxu0 0
  %167 = vmatprep.subr.bf16.mxu0 0
  %168 = vmatpush1.bf16.msra.mxu0 0
  %169 = vmatprep.mubr.bf16.mxu0 0
  %170 = vmatmul.mubr.bf16.gmra.mrb[0].mxu0 %v132
  %v171 = vpop.f32.mrb[0].mxu0
  %v172 = vadd.f32 %v117, %v171
  %v173 = vpop.f32.mrb[0].mxu0
  %v174 = vpop.f32.mrb[0].mxu0
  %v175 = vadd.f32 %v117, %v174
  %v176 = vpop.f32.mrb[0].mxu0
  %177 = vmatprep.mubr.bf16.mxu0 0
  %178 = vmatmul.mubr.bf16.gmra.mrb[0].mxu0 %v135
  %v179 = vpop.f32.mrb[0].mxu0
  %v180 = vadd.f32 %v117, %v179
  %v181 = vpop.f32.mrb[0].mxu0
  %v182 = vpop.f32.mrb[0].mxu0
  %v183 = vadd.f32 %v117, %v182
  %v184 = vpop.f32.mrb[0].mxu0
  %185 = vdwg.mxu0
  %v186 = vld [vmem:[%s0] sm:$0xf]
  %v187 = vld [vmem:[%s0 + $0x4] sm:$0xf]
  %v188 = vld [vmem:[%s0 + $0x8] sm:$0xf]
  %v189 = vld [vmem:[%s0 + $0xc] sm:$0xf]
  %v190 = vpack.c.bf16 %v95, %v92
  %v191 = vpack.c.bf16 %v103, %v100
  %v196 = vunpack.c.l.b16 %v186
  %v197 = vunpack.c.l.b16 %v187
  %v198 = vunpack.c.l.b16 %v188
  %v199 = vunpack.c.l.b16 %v189
  %v200 = vpack.c.b16 %v197, %v196
  %v201 = vpack.c.b16 %v199, %v198
  %v203 = vsel %vm50, %v200, 0
  %v206 = vsel %vm50, %v201, 0
  %208 = vmatprep.subr.bf16.mxu0 0
  %209 = vmatpush1.bf16.msra.mxu0 %v190
  %210 = vmatprep.subr.bf16.mxu0 0
  %211 = vmatpush1.bf16.msra.mxu0 %v191
  %212 = vmatprep.subr.bf16.mxu0 0
  %213 = vmatpush1.bf16.msra.mxu0 0
  %214 = vmatprep.subr.bf16.mxu0 0
  %215 = vmatpush1.bf16.msra.mxu0 0
  %216 = vmatprep.subr.bf16.mxu0 0
  %217 = vmatpush1.bf16.msra.mxu0 0
  %218 = vmatprep.subr.bf16.mxu0 0
  %219 = vmatpush1.bf16.msra.mxu0 0
  %220 = vmatprep.subr.bf16.mxu0 0
  %221 = vmatpush1.bf16.msra.mxu0 0
  %222 = vmatprep.subr.bf16.mxu0 0
  %223 = vmatpush1.bf16.msra.mxu0 0
  %224 = vmatprep.subr.bf16.mxu0 0
  %225 = vmatpush1.bf16.msra.mxu0 0
  %226 = vmatprep.subr.bf16.mxu0 0
  %227 = vmatpush1.bf16.msra.mxu0 0
  %228 = vmatprep.subr.bf16.mxu0 0
  %229 = vmatpush1.bf16.msra.mxu0 0
  %230 = vmatprep.subr.bf16.mxu0 0
  %231 = vmatpush1.bf16.msra.mxu0 0
  %232 = vmatprep.subr.bf16.mxu0 0
  %233 = vmatpush1.bf16.msra.mxu0 0
  %234 = vmatprep.subr.bf16.mxu0 0
  %235 = vmatpush1.bf16.msra.mxu0 0
  %236 = vmatprep.subr.bf16.mxu0 0
  %237 = vmatpush1.bf16.msra.mxu0 0
  %238 = vmatprep.subr.bf16.mxu0 0
  %239 = vmatpush1.bf16.msra.mxu0 0
  %240 = vmatprep.mubr.bf16.mxu0 0
  %241 = vmatmul.mubr.bf16.gmra.mrb[0].mxu0 %v203
  %v242 = vpop.f32.mrb[0].mxu0
  %v243 = vadd.f32 0.0, %v242
  %v244 = vpop.f32.mrb[0].mxu0
  %v245 = vpop.f32.mrb[0].mxu0
  %v246 = vadd.f32 0.0, %v245
  %v247 = vpop.f32.mrb[0].mxu0
  %248 = vmatprep.mubr.bf16.mxu0 0
  %249 = vmatmul.mubr.bf16.gmra.mrb[0].mxu0 %v206
  %v250 = vpop.f32.mrb[0].mxu0
  %v251 = vadd.f32 0.0, %v250
  %v252 = vpop.f32.mrb[0].mxu0
  %v253 = vpop.f32.mrb[0].mxu0
  %v254 = vadd.f32 0.0, %v253
  %v255 = vpop.f32.mrb[0].mxu0
  %256 = vdwg.mxu0
  %v257 = vadd.f32 %v172, %v243
  %v258 = vadd.f32 %v175, %v246
  %v259 = vadd.f32 %v180, %v251
  %v260 = vadd.f32 %v183, %v254
  %s261 = scalar_lea.vmem %s0, 16
  %v262 = vld [vmem:[%s261] sm:$0xf]
  %v263 = vld [vmem:[%s261 + $0x4] sm:$0xf]
  %v264 = vld [vmem:[%s261 + $0x8] sm:$0xf]
  %v265 = vld [vmem:[%s261 + $0xc] sm:$0xf]
  %v270 = vunpack.c.l.b16 %v262
  %v271 = vunpack.c.l.b16 %v263
  %v272 = vunpack.c.l.b16 %v264
  %v273 = vunpack.c.l.b16 %v265
  %v274 = vpack.c.b16 %v271, %v270
  %v275 = vpack.c.b16 %v273, %v272
  %278 = vrot.lane.b32.xlu0 %v190, 96
  %v279 = vpop.permute.xlu0 %278
  %280 = vrot.lane.b32.xlu0 %v191, 96
  %v281 = vpop.permute.xlu0 %280
  %v285 = vsel %vm50, %v274, 0
  %v288 = vsel %vm50, %v275, 0
  %290 = vmatprep.subr.bf16.mxu0 0
  %291 = vmatpush1.bf16.msra.mxu0 %v279
  %292 = vmatprep.subr.bf16.mxu0 0
  %293 = vmatpush1.bf16.msra.mxu0 %v281
  %294 = vmatprep.subr.bf16.mxu0 0
  %295 = vmatpush1.bf16.msra.mxu0 0
  %296 = vmatprep.subr.bf16.mxu0 0
  %297 = vmatpush1.bf16.msra.mxu0 0
  %298 = vmatprep.subr.bf16.mxu0 0
  %299 = vmatpush1.bf16.msra.mxu0 0
  %300 = vmatprep.subr.bf16.mxu0 0
  %301 = vmatpush1.bf16.msra.mxu0 0
  %302 = vmatprep.subr.bf16.mxu0 0
  %303 = vmatpush1.bf16.msra.mxu0 0
  %304 = vmatprep.subr.bf16.mxu0 0
  %305 = vmatpush1.bf16.msra.mxu0 0
  %306 = vmatprep.subr.bf16.mxu0 0
  %307 = vmatpush1.bf16.msra.mxu0 0
  %308 = vmatprep.subr.bf16.mxu0 0
  %309 = vmatpush1.bf16.msra.mxu0 0
  %310 = vmatprep.subr.bf16.mxu0 0
  %311 = vmatpush1.bf16.msra.mxu0 0
  %312 = vmatprep.subr.bf16.mxu0 0
  %313 = vmatpush1.bf16.msra.mxu0 0
  %314 = vmatprep.subr.bf16.mxu0 0
  %315 = vmatpush1.bf16.msra.mxu0 0
  %316 = vmatprep.subr.bf16.mxu0 0
  %317 = vmatpush1.bf16.msra.mxu0 0
  %318 = vmatprep.subr.bf16.mxu0 0
  %319 = vmatpush1.bf16.msra.mxu0 0
  %320 = vmatprep.subr.bf16.mxu0 0
  %321 = vmatpush1.bf16.msra.mxu0 0
  %322 = vmatprep.mubr.bf16.mxu0 0
  %323 = vmatmul.mubr.bf16.gmra.mrb[0].mxu0 %v285
  %v324 = vpop.f32.mrb[0].mxu0
  %v325 = vadd.f32 0.0, %v324
  %v326 = vpop.f32.mrb[0].mxu0
  %v327 = vpop.f32.mrb[0].mxu0
  %v328 = vadd.f32 0.0, %v327
  %v329 = vpop.f32.mrb[0].mxu0
  %330 = vmatprep.mubr.bf16.mxu0 0
  %331 = vmatmul.mubr.bf16.gmra.mrb[0].mxu0 %v288
  %v332 = vpop.f32.mrb[0].mxu0
  %v333 = vadd.f32 0.0, %v332
  %v334 = vpop.f32.mrb[0].mxu0
  %v335 = vpop.f32.mrb[0].mxu0
  %v336 = vadd.f32 0.0, %v335
  %v337 = vpop.f32.mrb[0].mxu0
  %338 = vdwg.mxu0
  %v339 = vadd.f32 %v257, %v325
  %v340 = vadd.f32 %v258, %v328
  %v341 = vadd.f32 %v259, %v333
  %v342 = vadd.f32 %v260, %v336
  %v343 = vmax.f32 %v339, 0.0
  %v344 = vmax.f32 %v340, 0.0
  %v345 = vmax.f32 %v341, 0.0
  %v346 = vmax.f32 %v342, 0.0
  %v347 = vadd.f32 %v30, %v343
  %v348 = vadd.f32 %v31, %v344
  %v349 = vadd.f32 %v32, %v345
  %v350 = vadd.f32 %v33, %v346
  %351 = vst.msk [vmem:[%s6] sm:$0xff] %vm50, %v347
  %352 = vst.msk [vmem:[%s6 + $0x8] sm:$0xff] %vm50, %v348
  %353 = vst.msk [vmem:[%s6 + $0x10] sm:$0xff] %vm50, %v349
  %354 = vst.msk [vmem:[%s6 + $0x18] sm:$0xff] %vm50, %v350
  // Predicated region
  $region26: #{res_rgcn_forward.5} parent=0 // pred_check
    _
  $region27: #{res_rgcn_forward.5} parent=0 // pred_check_branch
    %356 = sbr.rel (0) target = $region29
  $region28: #{res_rgcn_forward.5} parent=0 // pred_region
    _
  $region29: #{res_rgcn_forward.5} parent=0 // pred_fallthru
    _
  // Predicated region
  $region30: #{res_rgcn_forward.5} parent=0 // pred_check
    _
  $region31: #{res_rgcn_forward.5} parent=0 // pred_check_branch
    %358 = sbr.rel (0) target = $region33
  $region32: #{res_rgcn_forward.5} parent=0 // pred_region
    _
  $region33: #{res_rgcn_forward.5} parent=0 // pred_fallthru
    _

// kernel: res_rgcn_forward.7
$region0: #{res_rgcn_forward.7}
  #allocation0 [shape = 'u32[]', space=smem, size = 0x4, offset = 0x4, fixed_abs, tag = 'smem constant byte address 0x4 - core index']
  #allocation1 [shape = 'u32[144,128]{1,0:T(1,128)}', space=vmem, size = 0x12000, scoped, tag = 'internal scratch']
  %s0 = inlined_call_operand.vmem [shape: f32[32,32], index: 0, kind: input, shape index: {}]
  %s1 = inlined_call_operand.vmem [shape: f32[32,8], index: 1, kind: input, shape index: {}]
  %s2 = inlined_call_operand.vmem [shape: f32[1,8], index: 2, kind: input, shape index: {}]
  %s3 = inlined_call_operand.vmem [shape: f32[32,8], index: 3, kind: output, shape index: {}]
  %s4 = sld [smem:[#allocation0]]
  $region22: #{res_rgcn_forward.7} parent=0
    _
  %s6 = ssub.s32 1, %s4
  %s7 = scalar_select 0, %s6, %s4
  // Predicated region
  $region2: #{res_rgcn_forward.7} parent=0 // pred_check
    _
  $region3: #{res_rgcn_forward.7} parent=0 // pred_check_branch
    %9 = sbr.rel (0) target = $region5
  $region4: #{res_rgcn_forward.7} parent=0 // pred_region
    _
  $region5: #{res_rgcn_forward.7} parent=0 // pred_fallthru
    _
  // Predicated region
  $region6: #{res_rgcn_forward.7} parent=0 // pred_check
    _
  $region7: #{res_rgcn_forward.7} parent=0 // pred_check_branch
    %11 = sbr.rel (0) target = $region9
  $region8: #{res_rgcn_forward.7} parent=0 // pred_region
    _
  $region9: #{res_rgcn_forward.7} parent=0 // pred_fallthru
    _
  // Predicated region
  $region10: #{res_rgcn_forward.7} parent=0 // pred_check
    _
  $region11: #{res_rgcn_forward.7} parent=0 // pred_check_branch
    %13 = sbr.rel (0) target = $region13
  $region12: #{res_rgcn_forward.7} parent=0 // pred_region
    _
  $region13: #{res_rgcn_forward.7} parent=0 // pred_fallthru
    _
  %v14 = vld [vmem:[%s0] sm:$0xff]
  %v15 = vld [vmem:[%s0 + $0x8] sm:$0xff]
  %v16 = vld [vmem:[%s0 + $0x10] sm:$0xff]
  %v17 = vld [vmem:[%s0 + $0x18] sm:$0xff]
  %v18 = vld [vmem:[%s1] sm:$0xff]
  %v19 = vld [vmem:[%s1 + $0x8] sm:$0xff]
  %v20 = vld [vmem:[%s1 + $0x10] sm:$0xff]
  %v21 = vld [vmem:[%s1 + $0x18] sm:$0xff]
  %v22 = vld [vmem:[%s2] sm:$0x1]
  %v24 = vlaneseq
  %v25 = vshrl.u32 %v24, 7
  %v26 = vsub.s32 0, %v25
  %v27 = vrot.slane %v22, %v26
  %vm29 = vcmask 261120
  %v31 = vsel %vm29, %v14, 0
  %v34 = vsel %vm29, %v15, 0
  %v37 = vsel %vm29, %v16, 0
  %v40 = vsel %vm29, %v17, 0
  %42 = vmatprep.subr.mxu0 0.0
  %43 = vmatpush1.msra.mxu0 %v18
  %44 = vmatprep.subr.mxu0 0.0
  %45 = vmatpush1.msra.mxu0 %v19
  %46 = vmatprep.subr.mxu0 0.0
  %47 = vmatpush1.msra.mxu0 %v20
  %48 = vmatprep.subr.mxu0 0.0
  %49 = vmatpush1.msra.mxu0 %v21
  %50 = vmatprep.subr.mxu0 0.0
  %51 = vmatpush1.msra.mxu0 0.0
  %52 = vmatprep.subr.mxu0 0.0
  %53 = vmatpush1.msra.mxu0 0.0
  %54 = vmatprep.subr.mxu0 0.0
  %55 = vmatpush1.msra.mxu0 0.0
  %56 = vmatprep.subr.mxu0 0.0
  %57 = vmatpush1.msra.mxu0 0.0
  %58 = vmatprep.subr.mxu0 0.0
  %59 = vmatpush1.msra.mxu0 0.0
  %60 = vmatprep.subr.mxu0 0.0
  %61 = vmatpush1.msra.mxu0 0.0
  %62 = vmatprep.subr.mxu0 0.0
  %63 = vmatpush1.msra.mxu0 0.0
  %64 = vmatprep.subr.mxu0 0.0
  %65 = vmatpush1.msra.mxu0 0.0
  %66 = vmatprep.subr.mxu0 0.0
  %67 = vmatpush1.msra.mxu0 0.0
  %68 = vmatprep.subr.mxu0 0.0
  %69 = vmatpush1.msra.mxu0 0.0
  %70 = vmatprep.subr.mxu0 0.0
  %71 = vmatpush1.msra.mxu0 0.0
  %72 = vmatprep.subr.mxu0 0.0
  %73 = vmatpush1.msra.mxu0 0.0
  %74 = vmatprep.subr.mxu0 0.0
  %75 = vmatpush1.msra.mxu0 0.0
  %76 = vmatprep.subr.mxu0 0.0
  %77 = vmatpush1.msra.mxu0 0.0
  %78 = vmatprep.subr.mxu0 0.0
  %79 = vmatpush1.msra.mxu0 0.0
  %80 = vmatprep.subr.mxu0 0.0
  %81 = vmatpush1.msra.mxu0 0.0
  %82 = vmatprep.subr.mxu0 0.0
  %83 = vmatpush1.msra.mxu0 0.0
  %84 = vmatprep.subr.mxu0 0.0
  %85 = vmatpush1.msra.mxu0 0.0
  %86 = vmatprep.subr.mxu0 0.0
  %87 = vmatpush1.msra.mxu0 0.0
  %88 = vmatprep.subr.mxu0 0.0
  %89 = vmatpush1.msra.mxu0 0.0
  %90 = vmatprep.subr.mxu0 0.0
  %91 = vmatpush1.msra.mxu0 0.0
  %92 = vmatprep.subr.mxu0 0.0
  %93 = vmatpush1.msra.mxu0 0.0
  %94 = vmatprep.subr.mxu0 0.0
  %95 = vmatpush1.msra.mxu0 0.0
  %96 = vmatprep.subr.mxu0 0.0
  %97 = vmatpush1.msra.mxu0 0.0
  %98 = vmatprep.subr.mxu0 0.0
  %99 = vmatpush1.msra.mxu0 0.0
  %100 = vmatprep.subr.mxu0 0.0
  %101 = vmatpush1.msra.mxu0 0.0
  %102 = vmatprep.subr.mxu0 0.0
  %103 = vmatpush1.msra.mxu0 0.0
  %104 = vmatprep.subr.mxu0 0.0
  %105 = vmatpush1.msra.mxu0 0.0
  %106 = vmatprep.mubr.f32.mxu0 0.0
  %107 = vmatmul.mubr.f32.gmra.mrb[0].mxu0 %v31
  %v108 = vpop.f32.mrb[0].mxu0
  %v109 = vadd.f32 %v27, %v108
  %v110 = vpop.f32.mrb[0].mxu0
  %111 = vmatprep.mubr.f32.mxu0 0.0
  %112 = vmatmul.mubr.f32.gmra.mrb[0].mxu0 %v34
  %v113 = vpop.f32.mrb[0].mxu0
  %v114 = vadd.f32 %v27, %v113
  %v115 = vpop.f32.mrb[0].mxu0
  %116 = vmatprep.mubr.f32.mxu0 0.0
  %117 = vmatmul.mubr.f32.gmra.mrb[0].mxu0 %v37
  %v118 = vpop.f32.mrb[0].mxu0
  %v119 = vadd.f32 %v27, %v118
  %v120 = vpop.f32.mrb[0].mxu0
  %121 = vmatprep.mubr.f32.mxu0 0.0
  %122 = vmatmul.mubr.f32.gmra.mrb[0].mxu0 %v40
  %v123 = vpop.f32.mrb[0].mxu0
  %v124 = vadd.f32 %v27, %v123
  %v125 = vpop.f32.mrb[0].mxu0
  %126 = vdwg.mxu0
  %vm127 = vcmask 64512
  %128 = vst.msk [vmem:[%s3] sm:$0xff] %vm127, %v109
  %129 = vst.msk [vmem:[%s3 + $0x8] sm:$0xff] %vm127, %v114
  %130 = vst.msk [vmem:[%s3 + $0x10] sm:$0xff] %vm127, %v119
  %131 = vst.msk [vmem:[%s3 + $0x18] sm:$0xff] %vm127, %v124
  // Predicated region
  $region14: #{res_rgcn_forward.7} parent=0 // pred_check
    _
  $region15: #{res_rgcn_forward.7} parent=0 // pred_check_branch
    %133 = sbr.rel (0) target = $region17
  $region16: #{res_rgcn_forward.7} parent=0 // pred_region
    _
  $region17: #{res_rgcn_forward.7} parent=0 // pred_fallthru
    _
  // Predicated region
  $region18: #{res_rgcn_forward.7} parent=0 // pred_check
    _
  $region19: #{res_rgcn_forward.7} parent=0 // pred_check_branch
    %135 = sbr.rel (0) target = $region21
  $region20: #{res_rgcn_forward.7} parent=0 // pred_region
    _
  $region21: #{res_rgcn_forward.7} parent=0 // pred_fallthru
    _

</llo_original>
